<compile_context>
chip_gen: v5e
topology: v5e:2x2
jax: 0.10.0
libtpu: 0.0.40
codegen_flags: <defaults>
</compile_context>

<pallas_src>
import functools

import jax
import jax.numpy as jnp
from jax import lax
from jax.experimental import pallas as pl
from jax.experimental.pallas import tpu as pltpu

_LANE = 128
_CHUNK_ELEMS = 512 * _LANE            # 65536-elem inner strip (256 KiB f32)
_BLOCK_BYTES = 4 * 1024 * 1024        # 4 MiB per input per block (any dtype)
_FAST_MAX_ELEMS = 4096 * _LANE        # single-shot path up to 2 MiB f32 / input
_VMEM_LIMIT = 32 * 1024 * 1024        # safe scoped-VMEM cap on v5e/v6e/v7x


def _mse_small_kernel(x_ref, t_ref, loss_ref, *, total_n):
    """Whole array fits in one block: compute the mean directly (fast path)."""
    d = x_ref[...].astype(jnp.float32) - t_ref[...].astype(jnp.float32)
    loss_ref[0] = jnp.sum(d * d) / jnp.float32(total_n)


def _mse_stream_kernel(iota_ref, x_ref, t_ref, acc_ref, *, total_n, block_elems,
                       steps, full_blocks, any_edge):
    """Accumulate per-split partial sums of (x - t)^2 into a (CHUNK,) block."""
    p = pl.program_id(0)              # TensorCore split ("parallel" on v7x)
    i = pl.program_id(1)              # reduction step within the split
    blk = p * steps + i               # logical block index (may be a phantom)

    @pl.when(i == 0)
    def _():
        acc_ref[...] = jnp.zeros_like(acc_ref)

    n_chunks = block_elems // _CHUNK_ELEMS   # static

    def accumulate(masked):
        def body(c, carry):
            start = pl.multiple_of(c * _CHUNK_ELEMS, _CHUNK_ELEMS)
            xs = x_ref[pl.ds(start, _CHUNK_ELEMS)].astype(jnp.float32)
            ts = t_ref[pl.ds(start, _CHUNK_ELEMS)].astype(jnp.float32)
            d = xs - ts
            sq = d * d
            if masked:
                # Select (not multiply) after the square so garbage NaN/Inf from
                # the ragged/phantom tail can never leak into the sum.
                rem = total_n - blk * block_elems - start
                sq = jnp.where(iota_ref[...] < rem, sq, jnp.float32(0.0))
            acc_ref[...] += sq
            return carry

        lax.fori_loop(0, n_chunks, body, 0)

    if any_edge:
        @pl.when(blk < full_blocks)          # interior block: no mask work
        def _():
            accumulate(False)

        @pl.when(blk >= full_blocks)         # ragged final block or phantom step
        def _():
            accumulate(True)
    else:
        accumulate(False)


def _round_down(x, m):
    return (x // m) * m


def content_loss_forward(x, target):
    """Returns (x, loss): identity pass-through plus F.mse_loss(x, target)."""
    assert x.shape == target.shape, "input and target must have the same shape"
    n = int(x.size)
    assert n > 0

    xf = x.reshape(-1)        # free bitcast -- no HBM copy, no padding
    tf = target.reshape(-1)

    if n <= _FAST_MAX_ELEMS:
        # Single-shot path: whole arrays as one block (full-dim block shapes are
        # always legal, so ragged sizes need neither a mask nor padding).
        if n % _LANE == 0:    # lane-dense 2-D view when possible (free reshape)
            xs, ts = xf.reshape(-1, _LANE), tf.reshape(-1, _LANE)
        else:
            xs, ts = xf, tf
        spec = pl.BlockSpec(xs.shape, lambda i: (0,) * xs.ndim)
        loss = pl.pallas_call(
            functools.partial(_mse_small_kernel, total_n=n),
            out_shape=jax.ShapeDtypeStruct((1,), jnp.float32),
            grid=(1,),
            in_specs=[spec, spec],
            out_specs=pl.BlockSpec(memory_space=pltpu.SMEM),
            compiler_params=pltpu.CompilerParams(vmem_limit_bytes=_VMEM_LIMIT),
        )(xs, ts)
        return x, loss[0]

    # Streaming path: flat 1-D blocks of 4 MiB per input, 2-way core split.
    itemsize = jnp.dtype(x.dtype).itemsize
    default_block = _BLOCK_BYTES // itemsize           # 1M elems f32, 2M bf16
    block_elems = min(default_block, _round_down(n, _CHUNK_ELEMS))
    total_blocks = pl.cdiv(n, block_elems)
    splits = 2                                         # both TCs on v7x
    steps = pl.cdiv(total_blocks, splits)
    full_blocks = n // block_elems                     # blocks with no ragged tail
    any_edge = splits * steps > full_blocks            # ragged and/or phantom block

    def data_map(p, i):
        # Clamp phantom tail steps onto the last real block (its contribution is
        # masked to zero in-kernel); never lets the block DMA go out of bounds.
        return (jnp.minimum(p * steps + i, total_blocks - 1),)

    chunk_iota = jnp.arange(_CHUNK_ELEMS, dtype=jnp.int32)

    partials = pl.pallas_call(
        functools.partial(
            _mse_stream_kernel,
            total_n=n,
            block_elems=block_elems,
            steps=steps,
            full_blocks=full_blocks,
            any_edge=any_edge,
        ),
        out_shape=jax.ShapeDtypeStruct((splits * _CHUNK_ELEMS,), jnp.float32),
        grid=(splits, steps),
        in_specs=[
            pl.BlockSpec((_CHUNK_ELEMS,), lambda p, i: (0,)),   # chunk-local iota
            pl.BlockSpec((block_elems,), data_map),             # x
            pl.BlockSpec((block_elems,), data_map),             # target
        ],
        out_specs=pl.BlockSpec((_CHUNK_ELEMS,), lambda p, i: (p,)),
        compiler_params=pltpu.CompilerParams(
            dimension_semantics=("parallel", "arbitrary"),
            vmem_limit_bytes=_VMEM_LIMIT,
        ),
    )(chunk_iota, xf, tf)

    # Tiny final reduce (splits * 64K floats) + divide by the TRUE element count.
    loss = jnp.sum(partials, dtype=jnp.float32) / jnp.float32(n)
    return x, loss


class ContentLoss:
    """Mirrors the PyTorch module: stores the MSE loss, passes the input through."""

    def __init__(self, target):
        self.target = jax.lax.stop_gradient(target)
        self.loss = None

    def __call__(self, input_tensor):
        out, self.loss = content_loss_forward(input_tensor, self.target)
        return out


if __name__ == "__main__":
    key = jax.random.PRNGKey(0)

    def run_case(k, shape, dtype):
        k1, k2 = jax.random.split(k)
        x = jax.random.normal(k1, shape, dtype=jnp.float32).astype(dtype)
        t = jax.random.normal(k2, shape, dtype=jnp.float32).astype(dtype)
        out, loss = content_loss_forward(x, t)
        out = jax.block_until_ready(out)
        loss = jax.block_until_ready(loss)
        ref = jnp.mean((x.astype(jnp.float32) - t.astype(jnp.float32)) ** 2)
        assert jnp.allclose(loss, ref, rtol=1e-4, atol=1e-6), (shape, dtype, loss, ref)
        assert jnp.array_equal(out, x), shape

    keys = jax.random.split(key, 9)

    # Primary case via the module-style wrapper: small NCHW VGG-style feature map.
    k1, k2 = jax.random.split(keys[0])
    target = jax.random.normal(k1, (2, 4, 16, 16), dtype=jnp.float32)
    xin = jax.random.normal(k2, (2, 4, 16, 16), dtype=jnp.float32)
    layer = ContentLoss(target)
    out = jax.block_until_ready(layer(xin))
    loss = jax.block_until_ready(layer.loss)
    ref = jnp.mean((xin - target) ** 2)
    assert jnp.allclose(loss, ref, rtol=1e-4, atol=1e-6), (loss, ref)
    assert jnp.array_equal(out, xin)

    # Fast path, aligned bf16 (native dtype, halved HBM traffic).
    run_case(keys[1], (2, 4, 16, 16), jnp.bfloat16)
    # Fast path, tiny ragged size (n % 128 != 0, 1-D whole-array block).
    run_case(keys[2], (1, 3, 13, 13), jnp.float32)
    # Fast path, larger ragged size (no padding copy anywhere).
    run_case(keys[3], (2, 17, 100, 100), jnp.float32)
    # Streaming path, exactly 2 full blocks, no masking at all.
    run_case(keys[4], (8, 64, 64, 64), jnp.float32)
    # Streaming path, 3 blocks -> unconditional 2-way split + masked phantom step.
    run_case(keys[5], (12, 64, 64, 64), jnp.float32)
    # Streaming path, ragged final block (element-granular mask, no pad).
    run_case(keys[6], (3, 67, 101, 103), jnp.float32)
    # Streaming path, bf16 with dtype-aware (doubled-element) blocks.
    run_case(keys[7], (12, 64, 64, 64), jnp.bfloat16)

    print("KERNEL_OK")
</pallas_src>

<mosaic_0001>
module attributes {stable_mosaic.version = 11 : i64} {
  func.func @_mse_small_kernel(%arg0: i32, %arg1: memref<16x128xf32, #tpu.memory_space<vmem>>, %arg2: memref<16x128xf32, #tpu.memory_space<vmem>>, %arg3: memref<1xf32, #tpu.memory_space<smem>>) attributes {dimension_semantics = [#tpu.dimension_semantics<arbitrary>], iteration_bounds = array<i64: 1>, scalar_prefetch = 0 : i64, scratch_operands = 0 : i64, tpu.core_type = #tpu.core_type<tc>, window_params = [{pipeline_mode = #tpu.pipeline_mode<synchronous>, transform_indices = @transform_0, window_bounds = array<i64: 16, 128>}, {pipeline_mode = #tpu.pipeline_mode<synchronous>, transform_indices = @transform_1, window_bounds = array<i64: 16, 128>}, {transform_indices = @transform_2, window_bounds = array<i64: 1>}]} {
    %c0 = arith.constant 0 : index
    %c0_0 = arith.constant 0 : index
    %0 = vector.load %arg1[%c0, %c0_0] : memref<16x128xf32, #tpu.memory_space<vmem>>, vector<16x128xf32>
    %c0_1 = arith.constant 0 : index
    %c0_2 = arith.constant 0 : index
    %1 = vector.load %arg2[%c0_1, %c0_2] : memref<16x128xf32, #tpu.memory_space<vmem>>, vector<16x128xf32>
    %2 = arith.subf %0, %1 : vector<16x128xf32>
    %3 = arith.mulf %2, %2 : vector<16x128xf32>
    %4 = vector.shape_cast %3 : vector<16x128xf32> to vector<1x16x128xf32>
    %cst = arith.constant dense<0.000000e+00> : vector<1xf32>
    %5 = vector.multi_reduction <add>, %4, %cst [1, 2] : vector<1x16x128xf32> to vector<1xf32>
    %6 = vector.shape_cast %5 : vector<1xf32> to vector<1x1x1xf32>
    %7 = vector.extract %6[0, 0, 0] : f32 from vector<1x1x1xf32>
    %cst_3 = arith.constant 2.048000e+03 : f32
    %8 = arith.divf %7, %cst_3 : f32
    %c0_4 = arith.constant 0 : index
    %9 = memref.load %arg3[%c0_4] : memref<1xf32, #tpu.memory_space<smem>>
    memref.store %8, %arg3[%c0_4] : memref<1xf32, #tpu.memory_space<smem>>
    return
  }
  func.func @transform_0(%arg0: i32) -> (i32, i32) {
    %c0_i32 = arith.constant 0 : i32
    %c0_i32_0 = arith.constant 0 : i32
    %c0_i32_1 = arith.constant 0 : i32
    return %c0_i32, %c0_i32_0 : i32, i32
  }
  func.func @transform_1(%arg0: i32) -> (i32, i32) {
    %c0_i32 = arith.constant 0 : i32
    %c0_i32_0 = arith.constant 0 : i32
    %c0_i32_1 = arith.constant 0 : i32
    return %c0_i32, %c0_i32_0 : i32, i32
  }
  func.func @transform_2(%arg0: i32) -> i32 {
    %c0_i32 = arith.constant 0 : i32
    %c0_i32_0 = arith.constant 0 : i32
    return %c0_i32 : i32
  }
}

</mosaic_0001>

<llo_original>
// kernel: tpu_custom_call.1
$region0: #{tpu_custom_call.1}
  #allocation0 [shape = 'u32[]', space=smem, size = 0x4, offset = 0x4, fixed_abs, tag = 'smem constant byte address 0x4 - core index']
  #allocation1 [shape = 'u32[72,128]{1,0:T(1,128)}', space=vmem, size = 0x9000, scoped, tag = 'internal scratch']
  %s0 = inlined_call_operand.hbm [shape: f32[16,128], index: 0, kind: input, shape index: {}]
  %s1 = inlined_call_operand.hbm [shape: f32[16,128], index: 1, kind: input, shape index: {}]
  %s2 = inlined_call_operand.hbm [shape: f32[1], index: 2, kind: output, shape index: {}]
  %s3 = sld [smem:[#allocation0]]
  $region26: #{tpu_custom_call.1} parent=0
    _
  %s5 = ssub.s32 1, %s3
  %s6 = scalar_select 0, %s5, %s3
  $region1: #{tpu_custom_call.1} parent=0
    #allocation2 [shape = 'u8[8192]{0}', space=vmem, size = 0x2000, scoped, tag = 'input window, operand 0, single buffered']
    #allocation3 [shape = 's32[1]{0}', space=sflag, size = 0x4, scoped, tag = 'scoped memory for tpu_custom_call.1']
    #allocation4 [shape = 's32[1]{0}', space=sflag, size = 0x4, scoped, tag = 'scoped memory for tpu_custom_call.1']
    #allocation5 [shape = 'u8[8192]{0}', space=vmem, size = 0x2000, scoped, tag = 'input window, operand 1, single buffered']
    #allocation6 [shape = 's32[1]{0}', space=sflag, size = 0x4, scoped, tag = 'scoped memory for tpu_custom_call.1']
    #allocation7 [shape = 'u8[512]{0}', space=smem, size = 0x200, scoped, tag = 'output window, operand 0, single buffered']
    %7 = vsyncpa [#allocation3], 0
    %8 = vsyncpa [#allocation6], 0
    %9 = vsyncpa [#allocation4], 0
    // Predicated region
    $region2: #{tpu_custom_call.1} parent=1 // pred_check
      _
    $region3: #{tpu_custom_call.1} parent=1 // pred_check_branch
      %11 = sbr.rel (0) target = $region5
    $region4: #{tpu_custom_call.1} parent=1 // pred_region
      %13 = vsyncadd [#allocation3], 0
      %s14 = sshll.u32 %s0, 4
      %s15 = int_to_ptr.hbm [resolvable:$true] %s14
      %s16 = sshll.u32 [#allocation2], 4
      %s17 = int_to_ptr.vmem [resolvable:$true] %s16
      %22 = dma.hbm_to_vmem [thread:$0]  %s15, 256, %s17, [#allocation3], 128, 128, 8
    $region5: #{tpu_custom_call.1} parent=1 // pred_fallthru
      _
    // Predicated region
    $region6: #{tpu_custom_call.1} parent=1 // pred_check
      _
    $region7: #{tpu_custom_call.1} parent=1 // pred_check_branch
      %24 = sbr.rel (0) target = $region9
    $region8: #{tpu_custom_call.1} parent=1 // pred_region
      %26 = vsyncadd [#allocation6], 0
      %s27 = sshll.u32 %s1, 4
      %s28 = int_to_ptr.hbm [resolvable:$true] %s27
      %s29 = sshll.u32 [#allocation5], 4
      %s30 = int_to_ptr.vmem [resolvable:$true] %s29
      %35 = dma.hbm_to_vmem [thread:$0]  %s28, 256, %s30, [#allocation6], 128, 128, 8
    $region9: #{tpu_custom_call.1} parent=1 // pred_fallthru
      _
    // Predicated region
    $region10: #{tpu_custom_call.1} parent=1 // pred_check
      _
    $region11: #{tpu_custom_call.1} parent=1 // pred_check_branch
      %37 = sbr.rel (0) target = $region13
    $region12: #{tpu_custom_call.1} parent=1 // pred_region
      %39 = dma.done [#allocation3], 256
    $region13: #{tpu_custom_call.1} parent=1 // pred_fallthru
      _
    // Predicated region
    $region14: #{tpu_custom_call.1} parent=1 // pred_check
      _
    $region15: #{tpu_custom_call.1} parent=1 // pred_check_branch
      %41 = sbr.rel (0) target = $region17
    $region16: #{tpu_custom_call.1} parent=1 // pred_region
      %43 = dma.done [#allocation6], 256
    $region17: #{tpu_custom_call.1} parent=1 // pred_fallthru
      _
    %v44 = vld [vmem:[#allocation2] sm:$0xff]
    %v45 = vld [vmem:[#allocation2 + $0x8] sm:$0xff]
    %v46 = vld [vmem:[#allocation5] sm:$0xff]
    %v47 = vld [vmem:[#allocation5 + $0x8] sm:$0xff]
    %v48 = vsub.f32 %v44, %v46
    %v49 = vsub.f32 %v45, %v47
    %v50 = vmul.f32 %v48, %v48
    %v51 = vmul.f32 %v49, %v49
    %v52 = vadd.f32 %v50, %v51
    %53 = vadd.xlane.f32.xlu0 %v52
    %v54 = vpop.xlane.xlu0 %53
    %v55 = vrot.slane %v54, 4
    %v56 = vadd.f32 %v54, %v55
    %v57 = vrot.slane %v56, 2
    %v58 = vadd.f32 %v56, %v57
    %v59 = vrot.slane %v58, 1
    %v60 = vadd.f32 %v58, %v59
    %s61 = vtos %v60
    %v62 = vrcp.pop 2048.0
    %v63 = vmul.f32 2048.0, %v62
    %v64 = vsub.f32 1.0, %v63
    %v65 = vmul.f32 %v62, %v64
    %v66 = vadd.f32 %v62, %v65
    %vm67 = vweird.f32 %v62
    %v68 = vsel %vm67, %v62, %v66
    %s69 = vtos %v68
    %s70 = smul.f32 %s61, %s69
    %s71 = scalar_lea.smem [#allocation7], 0
    %72 = sst [smem:[%s71]] %s70
    // Predicated region
    $region18: #{tpu_custom_call.1} parent=1 // pred_check
      _
    $region19: #{tpu_custom_call.1} parent=1 // pred_check_branch
      %74 = sbr.rel (0) target = $region21
    $region20: #{tpu_custom_call.1} parent=1 // pred_region
      %76 = vsyncadd [#allocation4], 0
      %s78 = sshll.u32 %s2, 4
      %s79 = int_to_ptr.hbm [resolvable:$true] %s78
      %81 = dma.smem_to_hbm [#allocation7], 16, %s79, [#allocation4]
    $region21: #{tpu_custom_call.1} parent=1 // pred_fallthru
      _
    // Predicated region
    $region22: #{tpu_custom_call.1} parent=1 // pred_check
      _
    $region23: #{tpu_custom_call.1} parent=1 // pred_check_branch
      %83 = sbr.rel (0) target = $region25
    $region24: #{tpu_custom_call.1} parent=1 // pred_region
      %85 = dma.done [#allocation4], 16
    $region25: #{tpu_custom_call.1} parent=1 // pred_fallthru
      _
    %86 = sfence
    %87 = vsyncpa [#allocation3], 1
    %88 = vsyncpa [#allocation6], 1
    %89 = vsyncpa [#allocation4], 1

</llo_original>
